<compile_context>
chip_gen: v5e
topology: v5e:2x2
jax: 0.10.0
libtpu: 0.0.40
codegen_flags: <defaults>
</compile_context>

<pallas_src>
import jax
import jax.numpy as jnp
from jax import lax
from jax.experimental import pallas as pl
from jax.experimental.pallas import tpu as pltpu

BN_EPS = 1e-5
DEFAULT_TILE_B = 8192


def _round_up(n, m):
    return ((n + m - 1) // m) * m


# ---------------------------------------------------------------------------
# Kernel: one batch tile -> Linear/ReLU x2 -> Linear.  BN already folded away.
# ---------------------------------------------------------------------------
def mlp_kernel(x_ref, w1_ref, b1_ref, w2_ref, b2_ref, w3_ref, b3_ref, o_ref):
    x = x_ref[...].astype(jnp.bfloat16)       # no-op if the caller already supplies bf16

    # layer 1: Linear(+folded BN) -> ReLU -> Dropout(identity)
    # f32 accumulation on the MXU, then bf16 bias + ReLU on the VPU.
    h = jnp.dot(x, w1_ref[...], preferred_element_type=jnp.float32).astype(jnp.bfloat16)
    h = jnp.maximum(h + b1_ref[...], 0.0)

    # layer 2: Linear(+folded BN) -> ReLU -> Dropout(identity)
    h = jnp.dot(h, w2_ref[...], preferred_element_type=jnp.float32).astype(jnp.bfloat16)
    h = jnp.maximum(h + b2_ref[...], 0.0)

    # final layer: Linear only (f32 accum + f32 bias, cast to the output dtype)
    o_ref[...] = (jnp.dot(h, w3_ref[...], preferred_element_type=jnp.float32)
                  + b3_ref[...]).astype(o_ref.dtype)


# ---------------------------------------------------------------------------
# Host-side, one-time constant folding of eval-mode BatchNorm into the Linears.
# ---------------------------------------------------------------------------
def fold_bn_params(params):
    (w1, b1, g1, be1, m1, v1,
     w2, b2, g2, be2, m2, v2,
     w3, b3) = params

    s1 = g1 * lax.rsqrt(v1 + BN_EPS)              # (1, d1) per-output-feature scale
    w1f = (w1 * s1).astype(jnp.bfloat16)          # column-wise scale of (in, out) weight
    b1f = ((b1 - m1) * s1 + be1).astype(jnp.bfloat16)

    s2 = g2 * lax.rsqrt(v2 + BN_EPS)
    w2f = (w2 * s2).astype(jnp.bfloat16)
    b2f = ((b2 - m2) * s2 + be2).astype(jnp.bfloat16)

    return w1f, b1f, w2f, b2f, w3.astype(jnp.bfloat16), b3  # final bias stays f32


# ---------------------------------------------------------------------------
# Tile selection: as big as allowed, but keep >= 2 grid steps for v7x megacore.
# ---------------------------------------------------------------------------
def _choose_tile_b(B, tile_b_max):
    if B <= tile_b_max:
        if B >= 16:
            return _round_up(pl.cdiv(B, 2), 8)    # split into 2 tiles -> both TCs busy
        return _round_up(B, 8)
    return tile_b_max


# ---------------------------------------------------------------------------
# Wrapper: batch-tiled pallas_call (no padding copy; boundary tile is masked).
# ---------------------------------------------------------------------------
def mlpnet_forward(x, params, size_list, tile_b=DEFAULT_TILE_B, out_dtype=jnp.bfloat16):
    """x: any shape whose trailing elements flatten to size_list[0] per row
    (mirrors PyTorch's x.view(-1, size_list[0])).  Pass x in bf16 upstream to halve
    input HBM traffic; the kernel casts internally otherwise."""
    d_in, d_out = size_list[0], size_list[-1]

    x2d = x.reshape(-1, d_in)                 # no wrapper-side dtype / pad HBM pass
    B = x2d.shape[0]

    w1f, b1f, w2f, b2f, w3f, b3 = fold_bn_params(params)
    operands = (x2d, w1f, b1f, w2f, b2f, w3f, b3)

    tile_b = _choose_tile_b(B, tile_b)
    grid = (pl.cdiv(B, tile_b),)              # non-divisible boundary tile handled by masking

    x_spec = pl.BlockSpec((tile_b, d_in), lambda i: (i, 0))
    out_spec = pl.BlockSpec((tile_b, d_out), lambda i: (i, 0))

    def const_specs(single_buffered):
        kwargs = dict(pipeline_mode=pl.Buffered(1)) if single_buffered else {}
        return [pl.BlockSpec(op.shape, lambda i, _n=op.ndim: (0,) * _n, **kwargs)
                for op in operands[1:]]

    last_err = None
    # Constant-index_map blocks never re-DMA, so a second buffer is dead VMEM; request
    # single buffering, but fall back to the default spec if the API rejects it.
    for single_buffered in (True, False):
        try:
            return pl.pallas_call(
                mlp_kernel,
                out_shape=jax.ShapeDtypeStruct((B, d_out), out_dtype),
                grid=grid,
                in_specs=[x_spec] + const_specs(single_buffered),
                out_specs=out_spec,
                compiler_params=pltpu.CompilerParams(
                    dimension_semantics=("parallel",),
                    vmem_limit_bytes=48 << 20,
                ),
            )(*operands)
        except Exception as e:                # API/version fallback only
            last_err = e
    raise last_err


# ---------------------------------------------------------------------------
# Parameter init matching the PyTorch module's shapes (Linear weights stored
# pre-transposed as (in, out)); BatchNorm1d defaults.
# ---------------------------------------------------------------------------
def init_params(key, size_list):
    assert len(size_list) == 4, "this script instantiates the 3-layer case"
    d0, d1, d2, d3 = size_list
    ks = jax.random.split(key, 6)

    def lin(kw, kb, din, dout):
        bound = 1.0 / jnp.sqrt(jnp.float32(din))
        w = jax.random.uniform(kw, (din, dout), jnp.float32, -bound, bound)
        b = jax.random.uniform(kb, (1, dout), jnp.float32, -bound, bound)
        return w, b

    w1, b1 = lin(ks[0], ks[1], d0, d1)
    w2, b2 = lin(ks[2], ks[3], d1, d2)
    w3, b3 = lin(ks[4], ks[5], d2, d3)

    g1, be1 = jnp.ones((1, d1), jnp.float32), jnp.zeros((1, d1), jnp.float32)
    m1, v1 = jnp.zeros((1, d1), jnp.float32), jnp.ones((1, d1), jnp.float32)
    g2, be2 = jnp.ones((1, d2), jnp.float32), jnp.zeros((1, d2), jnp.float32)
    m2, v2 = jnp.zeros((1, d2), jnp.float32), jnp.ones((1, d2), jnp.float32)

    return (w1, b1, g1, be1, m1, v1,
            w2, b2, g2, be2, m2, v2,
            w3, b3)


# ---------------------------------------------------------------------------
# References for correctness checks.
# ---------------------------------------------------------------------------
def reference_forward_f32(x, params, size_list):
    """Original (un-folded, f32) eval-mode semantics."""
    (w1, b1, g1, be1, m1, v1,
     w2, b2, g2, be2, m2, v2,
     w3, b3) = params
    h = x.reshape(-1, size_list[0]).astype(jnp.float32)
    h = h @ w1 + b1
    h = (h - m1) * (g1 / jnp.sqrt(v1 + BN_EPS)) + be1
    h = jnp.maximum(h, 0.0)
    h = h @ w2 + b2
    h = (h - m2) * (g2 / jnp.sqrt(v2 + BN_EPS)) + be2
    h = jnp.maximum(h, 0.0)
    return h @ w3 + b3


def reference_forward_folded_bf16(x, params, size_list):
    """Mirror of the kernel's compute path (folded BN, bf16 operands/activations, f32 accum)."""
    w1f, b1f, w2f, b2f, w3f, b3 = fold_bn_params(params)
    h = x.reshape(-1, size_list[0]).astype(jnp.bfloat16)
    h = jnp.dot(h, w1f, preferred_element_type=jnp.float32).astype(jnp.bfloat16)
    h = jnp.maximum(h + b1f, 0.0)
    h = jnp.dot(h, w2f, preferred_element_type=jnp.float32).astype(jnp.bfloat16)
    h = jnp.maximum(h + b2f, 0.0)
    out = jnp.dot(h, w3f, preferred_element_type=jnp.float32) + b3
    return out.astype(jnp.bfloat16)


def _check(out, x, params, size_list):
    out_f32 = out.astype(jnp.float32)
    ref_folded = reference_forward_folded_bf16(x, params, size_list).astype(jnp.float32)
    assert jnp.allclose(out_f32, ref_folded, atol=2e-2, rtol=2e-2), "mismatch vs folded bf16 ref"
    ref_f32 = reference_forward_f32(x, params, size_list)
    assert jnp.allclose(out_f32, ref_f32, atol=7e-2, rtol=7e-2), "mismatch vs f32 eval-mode ref"


if __name__ == "__main__":
    # size_list: [input_dim, hidden1, hidden2, num_classes]
    size_list = [64, 128, 128, 32]

    key = jax.random.PRNGKey(0)
    kx, kx2, kp = jax.random.split(key, 3)
    params = init_params(kp, size_list)

    # small (batch, width, width) input per the module docstring: 8 x 8 x 8 -> rows of 64 features
    x = jax.random.normal(kx, (8, 8, 8), dtype=jnp.float32)
    out = jax.block_until_ready(mlpnet_forward(x, params, size_list))
    assert out.shape == (8, size_list[-1])
    _check(out, x, params, size_list)

    # ragged batch: exercises the >= 2-step grid and the masked boundary tile (no jnp.pad copy)
    x2 = jax.random.normal(kx2, (40, 8, 8), dtype=jnp.float32)
    out2 = jax.block_until_ready(mlpnet_forward(x2, params, size_list))
    assert out2.shape == (40, size_list[-1])
    _check(out2, x2, params, size_list)

    print("KERNEL_OK")
</pallas_src>

<mosaic_0001>
module attributes {stable_mosaic.version = 11 : i64} {
  func.func @mlp_kernel(%arg0: i32, %arg1: memref<8x64xf32, #tpu.memory_space<vmem>>, %arg2: memref<64x128xbf16, #tpu.memory_space<vmem>>, %arg3: memref<1x128xbf16, #tpu.memory_space<vmem>>, %arg4: memref<128x128xbf16, #tpu.memory_space<vmem>>, %arg5: memref<1x128xbf16, #tpu.memory_space<vmem>>, %arg6: memref<128x32xbf16, #tpu.memory_space<vmem>>, %arg7: memref<1x32xf32, #tpu.memory_space<vmem>>, %arg8: memref<8x32xbf16, #tpu.memory_space<vmem>>) attributes {dimension_semantics = [#tpu.dimension_semantics<parallel>], iteration_bounds = array<i64: 1>, scalar_prefetch = 0 : i64, scratch_operands = 0 : i64, tpu.core_type = #tpu.core_type<tc>, window_params = [{transform_indices = @transform_0, window_bounds = array<i64: 8, 64>}, {pipeline_mode = #tpu.pipeline_mode<synchronous>, transform_indices = @transform_1, window_bounds = array<i64: 64, 128>}, {pipeline_mode = #tpu.pipeline_mode<synchronous>, transform_indices = @transform_2, window_bounds = array<i64: 1, 128>}, {pipeline_mode = #tpu.pipeline_mode<synchronous>, transform_indices = @transform_3, window_bounds = array<i64: 128, 128>}, {pipeline_mode = #tpu.pipeline_mode<synchronous>, transform_indices = @transform_4, window_bounds = array<i64: 1, 128>}, {pipeline_mode = #tpu.pipeline_mode<synchronous>, transform_indices = @transform_5, window_bounds = array<i64: 128, 32>}, {pipeline_mode = #tpu.pipeline_mode<synchronous>, transform_indices = @transform_6, window_bounds = array<i64: 1, 32>}, {transform_indices = @transform_7, window_bounds = array<i64: 8, 32>}]} {
    %c0 = arith.constant 0 : index
    %c0_0 = arith.constant 0 : index
    %0 = vector.load %arg1[%c0, %c0_0] : memref<8x64xf32, #tpu.memory_space<vmem>>, vector<8x64xf32>
    %1 = arith.truncf %0 : vector<8x64xf32> to vector<8x64xbf16>
    %c0_1 = arith.constant 0 : index
    %c0_2 = arith.constant 0 : index
    %2 = vector.load %arg2[%c0_1, %c0_2] : memref<64x128xbf16, #tpu.memory_space<vmem>>, vector<64x128xbf16>
    %cst = arith.constant dense<0.000000e+00> : vector<8x128xf32>
    %3 = tpu.matmul %1, %2, %cst {dimension_numbers = #tpu.dot_dimension_numbers<[1], [0], [0], [1], [0, 0, 1, 1], [], []>} : vector<8x64xbf16>, vector<64x128xbf16>, vector<8x128xf32> -> vector<8x128xf32>
    %4 = arith.truncf %3 : vector<8x128xf32> to vector<8x128xbf16>
    %c0_3 = arith.constant 0 : index
    %c0_4 = arith.constant 0 : index
    %5 = vector.load %arg3[%c0_3, %c0_4] : memref<1x128xbf16, #tpu.memory_space<vmem>>, vector<1x128xbf16>
    %6 = vector.broadcast %5 : vector<1x128xbf16> to vector<8x128xbf16>
    %7 = arith.addf %4, %6 : vector<8x128xbf16>
    %cst_5 = arith.constant 0.000000e+00 : bf16
    %8 = vector.broadcast %cst_5 : bf16 to vector<8x128xbf16>
    %9 = arith.maximumf %7, %8 : vector<8x128xbf16>
    %c0_6 = arith.constant 0 : index
    %c0_7 = arith.constant 0 : index
    %10 = vector.load %arg4[%c0_6, %c0_7] : memref<128x128xbf16, #tpu.memory_space<vmem>>, vector<128x128xbf16>
    %cst_8 = arith.constant dense<0.000000e+00> : vector<8x128xf32>
    %11 = tpu.matmul %9, %10, %cst_8 {dimension_numbers = #tpu.dot_dimension_numbers<[1], [0], [0], [1], [0, 0, 1, 1], [], []>} : vector<8x128xbf16>, vector<128x128xbf16>, vector<8x128xf32> -> vector<8x128xf32>
    %12 = arith.truncf %11 : vector<8x128xf32> to vector<8x128xbf16>
    %c0_9 = arith.constant 0 : index
    %c0_10 = arith.constant 0 : index
    %13 = vector.load %arg5[%c0_9, %c0_10] : memref<1x128xbf16, #tpu.memory_space<vmem>>, vector<1x128xbf16>
    %14 = vector.broadcast %13 : vector<1x128xbf16> to vector<8x128xbf16>
    %15 = arith.addf %12, %14 : vector<8x128xbf16>
    %cst_11 = arith.constant 0.000000e+00 : bf16
    %16 = vector.broadcast %cst_11 : bf16 to vector<8x128xbf16>
    %17 = arith.maximumf %15, %16 : vector<8x128xbf16>
    %c0_12 = arith.constant 0 : index
    %c0_13 = arith.constant 0 : index
    %18 = vector.load %arg6[%c0_12, %c0_13] : memref<128x32xbf16, #tpu.memory_space<vmem>>, vector<128x32xbf16>
    %cst_14 = arith.constant dense<0.000000e+00> : vector<8x32xf32>
    %19 = tpu.matmul %17, %18, %cst_14 {dimension_numbers = #tpu.dot_dimension_numbers<[1], [0], [0], [1], [0, 0, 1, 1], [], []>} : vector<8x128xbf16>, vector<128x32xbf16>, vector<8x32xf32> -> vector<8x32xf32>
    %c0_15 = arith.constant 0 : index
    %c0_16 = arith.constant 0 : index
    %20 = vector.load %arg7[%c0_15, %c0_16] : memref<1x32xf32, #tpu.memory_space<vmem>>, vector<1x32xf32>
    %21 = vector.broadcast %20 : vector<1x32xf32> to vector<8x32xf32>
    %22 = arith.addf %19, %21 : vector<8x32xf32>
    %23 = arith.truncf %22 : vector<8x32xf32> to vector<8x32xbf16>
    %c0_17 = arith.constant 0 : index
    %c0_18 = arith.constant 0 : index
    %24 = vector.load %arg8[%c0_17, %c0_18] : memref<8x32xbf16, #tpu.memory_space<vmem>>, vector<8x32xbf16>
    tpu.vector_store %arg8[%c0_17, %c0_18], %23 {strides = array<i32>} : memref<8x32xbf16, #tpu.memory_space<vmem>>, vector<8x32xbf16>,
    return
  }
  func.func @transform_0(%arg0: i32) -> (i32, i32) {
    %c0_i32 = arith.constant 0 : i32
    %c0_i32_0 = arith.constant 0 : i32
    return %arg0, %c0_i32 : i32, i32
  }
  func.func @transform_1(%arg0: i32) -> (i32, i32) {
    %c0_i32 = arith.constant 0 : i32
    %c0_i32_0 = arith.constant 0 : i32
    %c0_i32_1 = arith.constant 0 : i32
    return %c0_i32, %c0_i32_0 : i32, i32
  }
  func.func @transform_2(%arg0: i32) -> (i32, i32) {
    %c0_i32 = arith.constant 0 : i32
    %c0_i32_0 = arith.constant 0 : i32
    %c0_i32_1 = arith.constant 0 : i32
    return %c0_i32, %c0_i32_0 : i32, i32
  }
  func.func @transform_3(%arg0: i32) -> (i32, i32) {
    %c0_i32 = arith.constant 0 : i32
    %c0_i32_0 = arith.constant 0 : i32
    %c0_i32_1 = arith.constant 0 : i32
    return %c0_i32, %c0_i32_0 : i32, i32
  }
  func.func @transform_4(%arg0: i32) -> (i32, i32) {
    %c0_i32 = arith.constant 0 : i32
    %c0_i32_0 = arith.constant 0 : i32
    %c0_i32_1 = arith.constant 0 : i32
    return %c0_i32, %c0_i32_0 : i32, i32
  }
  func.func @transform_5(%arg0: i32) -> (i32, i32) {
    %c0_i32 = arith.constant 0 : i32
    %c0_i32_0 = arith.constant 0 : i32
    %c0_i32_1 = arith.constant 0 : i32
    return %c0_i32, %c0_i32_0 : i32, i32
  }
  func.func @transform_6(%arg0: i32) -> (i32, i32) {
    %c0_i32 = arith.constant 0 : i32
    %c0_i32_0 = arith.constant 0 : i32
    %c0_i32_1 = arith.constant 0 : i32
    return %c0_i32, %c0_i32_0 : i32, i32
  }
  func.func @transform_7(%arg0: i32) -> (i32, i32) {
    %c0_i32 = arith.constant 0 : i32
    %c0_i32_0 = arith.constant 0 : i32
    return %arg0, %c0_i32 : i32, i32
  }
}

module attributes {stable_mosaic.version = 11 : i64} {
  func.func @mlp_kernel(%arg0: i32, %arg1: memref<8x64xf32, #tpu.memory_space<vmem>>, %arg2: memref<64x128xbf16, #tpu.memory_space<vmem>>, %arg3: memref<1x128xbf16, #tpu.memory_space<vmem>>, %arg4: memref<128x128xbf16, #tpu.memory_space<vmem>>, %arg5: memref<1x128xbf16, #tpu.memory_space<vmem>>, %arg6: memref<128x32xbf16, #tpu.memory_space<vmem>>, %arg7: memref<1x32xf32, #tpu.memory_space<vmem>>, %arg8: memref<8x32xbf16, #tpu.memory_space<vmem>>) attributes {dimension_semantics = [#tpu.dimension_semantics<parallel>], iteration_bounds = array<i64: 1>, scalar_prefetch = 0 : i64, scratch_operands = 0 : i64, tpu.core_type = #tpu.core_type<tc>, window_params = [{transform_indices = @transform_0, window_bounds = array<i64: 8, 64>}, {pipeline_mode = #tpu.pipeline_mode<synchronous>, transform_indices = @transform_1, window_bounds = array<i64: 64, 128>}, {pipeline_mode = #tpu.pipeline_mode<synchronous>, transform_indices = @transform_2, window_bounds = array<i64: 1, 128>}, {pipeline_mode = #tpu.pipeline_mode<synchronous>, transform_indices = @transform_3, window_bounds = array<i64: 128, 128>}, {pipeline_mode = #tpu.pipeline_mode<synchronous>, transform_indices = @transform_4, window_bounds = array<i64: 1, 128>}, {pipeline_mode = #tpu.pipeline_mode<synchronous>, transform_indices = @transform_5, window_bounds = array<i64: 128, 32>}, {pipeline_mode = #tpu.pipeline_mode<synchronous>, transform_indices = @transform_6, window_bounds = array<i64: 1, 32>}, {transform_indices = @transform_7, window_bounds = array<i64: 8, 32>}]} {
    %c0 = arith.constant 0 : index
    %c0_0 = arith.constant 0 : index
    %0 = vector.load %arg1[%c0, %c0_0] : memref<8x64xf32, #tpu.memory_space<vmem>>, vector<8x64xf32>
    %1 = arith.truncf %0 : vector<8x64xf32> to vector<8x64xbf16>
    %c0_1 = arith.constant 0 : index
    %c0_2 = arith.constant 0 : index
    %2 = vector.load %arg2[%c0_1, %c0_2] : memref<64x128xbf16, #tpu.memory_space<vmem>>, vector<64x128xbf16>
    %cst = arith.constant dense<0.000000e+00> : vector<8x128xf32>
    %3 = tpu.matmul %1, %2, %cst {dimension_numbers = #tpu.dot_dimension_numbers<[1], [0], [0], [1], [0, 0, 1, 1], [], []>} : vector<8x64xbf16>, vector<64x128xbf16>, vector<8x128xf32> -> vector<8x128xf32>
    %4 = arith.truncf %3 : vector<8x128xf32> to vector<8x128xbf16>
    %c0_3 = arith.constant 0 : index
    %c0_4 = arith.constant 0 : index
    %5 = vector.load %arg3[%c0_3, %c0_4] : memref<1x128xbf16, #tpu.memory_space<vmem>>, vector<1x128xbf16>
    %6 = vector.broadcast %5 : vector<1x128xbf16> to vector<8x128xbf16>
    %7 = arith.addf %4, %6 : vector<8x128xbf16>
    %cst_5 = arith.constant 0.000000e+00 : bf16
    %8 = vector.broadcast %cst_5 : bf16 to vector<8x128xbf16>
    %9 = arith.maximumf %7, %8 : vector<8x128xbf16>
    %c0_6 = arith.constant 0 : index
    %c0_7 = arith.constant 0 : index
    %10 = vector.load %arg4[%c0_6, %c0_7] : memref<128x128xbf16, #tpu.memory_space<vmem>>, vector<128x128xbf16>
    %cst_8 = arith.constant dense<0.000000e+00> : vector<8x128xf32>
    %11 = tpu.matmul %9, %10, %cst_8 {dimension_numbers = #tpu.dot_dimension_numbers<[1], [0], [0], [1], [0, 0, 1, 1], [], []>} : vector<8x128xbf16>, vector<128x128xbf16>, vector<8x128xf32> -> vector<8x128xf32>
    %12 = arith.truncf %11 : vector<8x128xf32> to vector<8x128xbf16>
    %c0_9 = arith.constant 0 : index
    %c0_10 = arith.constant 0 : index
    %13 = vector.load %arg5[%c0_9, %c0_10] : memref<1x128xbf16, #tpu.memory_space<vmem>>, vector<1x128xbf16>
    %14 = vector.broadcast %13 : vector<1x128xbf16> to vector<8x128xbf16>
    %15 = arith.addf %12, %14 : vector<8x128xbf16>
    %cst_11 = arith.constant 0.000000e+00 : bf16
    %16 = vector.broadcast %cst_11 : bf16 to vector<8x128xbf16>
    %17 = arith.maximumf %15, %16 : vector<8x128xbf16>
    %c0_12 = arith.constant 0 : index
    %c0_13 = arith.constant 0 : index
    %18 = vector.load %arg6[%c0_12, %c0_13] : memref<128x32xbf16, #tpu.memory_space<vmem>>, vector<128x32xbf16>
    %cst_14 = arith.constant dense<0.000000e+00> : vector<8x32xf32>
    %19 = tpu.matmul %17, %18, %cst_14 {dimension_numbers = #tpu.dot_dimension_numbers<[1], [0], [0], [1], [0, 0, 1, 1], [], []>} : vector<8x128xbf16>, vector<128x32xbf16>, vector<8x32xf32> -> vector<8x32xf32>
    %c0_15 = arith.constant 0 : index
    %c0_16 = arith.constant 0 : index
    %20 = vector.load %arg7[%c0_15, %c0_16] : memref<1x32xf32, #tpu.memory_space<vmem>>, vector<1x32xf32>
    %21 = vector.broadcast %20 : vector<1x32xf32> to vector<8x32xf32>
    %22 = arith.addf %19, %21 : vector<8x32xf32>
    %23 = arith.truncf %22 : vector<8x32xf32> to vector<8x32xbf16>
    %c0_17 = arith.constant 0 : index
    %c0_18 = arith.constant 0 : index
    %24 = vector.load %arg8[%c0_17, %c0_18] : memref<8x32xbf16, #tpu.memory_space<vmem>>, vector<8x32xbf16>
    tpu.vector_store %arg8[%c0_17, %c0_18], %23 {strides = array<i32>} : memref<8x32xbf16, #tpu.memory_space<vmem>>, vector<8x32xbf16>,
    return
  }
  func.func @transform_0(%arg0: i32) -> (i32, i32) {
    %c0_i32 = arith.constant 0 : i32
    %c0_i32_0 = arith.constant 0 : i32
    return %arg0, %c0_i32 : i32, i32
  }
  func.func @transform_1(%arg0: i32) -> (i32, i32) {
    %c0_i32 = arith.constant 0 : i32
    %c0_i32_0 = arith.constant 0 : i32
    %c0_i32_1 = arith.constant 0 : i32
    return %c0_i32, %c0_i32_0 : i32, i32
  }
  func.func @transform_2(%arg0: i32) -> (i32, i32) {
    %c0_i32 = arith.constant 0 : i32
    %c0_i32_0 = arith.constant 0 : i32
    %c0_i32_1 = arith.constant 0 : i32
    return %c0_i32, %c0_i32_0 : i32, i32
  }
  func.func @transform_3(%arg0: i32) -> (i32, i32) {
    %c0_i32 = arith.constant 0 : i32
    %c0_i32_0 = arith.constant 0 : i32
    %c0_i32_1 = arith.constant 0 : i32
    return %c0_i32, %c0_i32_0 : i32, i32
  }
  func.func @transform_4(%arg0: i32) -> (i32, i32) {
    %c0_i32 = arith.constant 0 : i32
    %c0_i32_0 = arith.constant 0 : i32
    %c0_i32_1 = arith.constant 0 : i32
    return %c0_i32, %c0_i32_0 : i32, i32
  }
  func.func @transform_5(%arg0: i32) -> (i32, i32) {
    %c0_i32 = arith.constant 0 : i32
    %c0_i32_0 = arith.constant 0 : i32
    %c0_i32_1 = arith.constant 0 : i32
    return %c0_i32, %c0_i32_0 : i32, i32
  }
  func.func @transform_6(%arg0: i32) -> (i32, i32) {
    %c0_i32 = arith.constant 0 : i32
    %c0_i32_0 = arith.constant 0 : i32
    %c0_i32_1 = arith.constant 0 : i32
    return %c0_i32, %c0_i32_0 : i32, i32
  }
  func.func @transform_7(%arg0: i32) -> (i32, i32) {
    %c0_i32 = arith.constant 0 : i32
    %c0_i32_0 = arith.constant 0 : i32
    return %arg0, %c0_i32 : i32, i32
  }
}

</mosaic_0001>

<llo_original>
// kernel: tpu_custom_call.1
$region0: #{tpu_custom_call.1}
  #allocation0 [shape = 'u32[]', space=smem, size = 0x4, offset = 0x4, fixed_abs, tag = 'smem constant byte address 0x4 - core index']
  #allocation1 [shape = 'u32[72,128]{1,0:T(1,128)}', space=vmem, size = 0x9000, scoped, tag = 'internal scratch']
  %s0 = inlined_call_operand.vmem [shape: f32[8,64], index: 0, kind: input, shape index: {}]
  %s1 = inlined_call_operand.hbm [shape: bf16[64,128], index: 1, kind: input, shape index: {}]
  %s2 = inlined_call_operand.vmem [shape: bf16[1,128], index: 2, kind: input, shape index: {}]
  %s3 = inlined_call_operand.vmem [shape: bf16[128,128], index: 3, kind: input, shape index: {}]
  %s4 = inlined_call_operand.vmem [shape: bf16[1,128], index: 4, kind: input, shape index: {}]
  %s5 = inlined_call_operand.vmem [shape: bf16[128,32], index: 5, kind: input, shape index: {}]
  %s6 = inlined_call_operand.vmem [shape: f32[1,32], index: 6, kind: input, shape index: {}]
  %s7 = inlined_call_operand.hbm [shape: bf16[8,32], index: 7, kind: output, shape index: {}]
  %s8 = sld [smem:[#allocation0]]
  $region42: #{tpu_custom_call.1} parent=0
    _
  %s10 = ssub.s32 1, %s8
  %s11 = scalar_select 0, %s10, %s8
  $region1: #{tpu_custom_call.1} parent=0
    #allocation2 [shape = 'u8[16384]{0}', space=vmem, size = 0x4000, scoped, tag = 'input window, operand 1, single buffered']
    #allocation3 [shape = 's32[1]{0}', space=sflag, size = 0x4, scoped, tag = 'scoped memory for tpu_custom_call.1']
    #allocation4 [shape = 's32[1]{0}', space=sflag, size = 0x4, scoped, tag = 'scoped memory for tpu_custom_call.1']
    #allocation5 [shape = 'u8[2048]{0}', space=vmem, size = 0x800, scoped, tag = 'output window, operand 0, single buffered']
    %12 = vsyncpa [#allocation3], 0
    %13 = vsyncpa [#allocation4], 0
    // Predicated region
    $region2: #{tpu_custom_call.1} parent=1 // pred_check
      _
    $region3: #{tpu_custom_call.1} parent=1 // pred_check_branch
      %15 = sbr.rel (0) target = $region5
    $region4: #{tpu_custom_call.1} parent=1 // pred_region
      _
    $region5: #{tpu_custom_call.1} parent=1 // pred_fallthru
      _
    // Predicated region
    $region6: #{tpu_custom_call.1} parent=1 // pred_check
      _
    $region7: #{tpu_custom_call.1} parent=1 // pred_check_branch
      %17 = sbr.rel (0) target = $region9
    $region8: #{tpu_custom_call.1} parent=1 // pred_region
      %19 = vsyncadd [#allocation3], 0
      %s20 = sshll.u32 %s1, 4
      %s21 = int_to_ptr.hbm [resolvable:$true] %s20
      %s22 = sshll.u32 [#allocation2], 4
      %s23 = int_to_ptr.vmem [resolvable:$true] %s22
      %28 = dma.hbm_to_vmem [thread:$0]  %s21, 512, %s23, [#allocation3], 64, 64, 4
    $region9: #{tpu_custom_call.1} parent=1 // pred_fallthru
      _
    // Predicated region
    $region10: #{tpu_custom_call.1} parent=1 // pred_check
      _
    $region11: #{tpu_custom_call.1} parent=1 // pred_check_branch
      %30 = sbr.rel (0) target = $region13
    $region12: #{tpu_custom_call.1} parent=1 // pred_region
      _
    $region13: #{tpu_custom_call.1} parent=1 // pred_fallthru
      _
    // Predicated region
    $region14: #{tpu_custom_call.1} parent=1 // pred_check
      _
    $region15: #{tpu_custom_call.1} parent=1 // pred_check_branch
      %32 = sbr.rel (0) target = $region17
    $region16: #{tpu_custom_call.1} parent=1 // pred_region
      _
    $region17: #{tpu_custom_call.1} parent=1 // pred_fallthru
      _
    // Predicated region
    $region18: #{tpu_custom_call.1} parent=1 // pred_check
      _
    $region19: #{tpu_custom_call.1} parent=1 // pred_check_branch
      %34 = sbr.rel (0) target = $region21
    $region20: #{tpu_custom_call.1} parent=1 // pred_region
      _
    $region21: #{tpu_custom_call.1} parent=1 // pred_fallthru
      _
    // Predicated region
    $region22: #{tpu_custom_call.1} parent=1 // pred_check
      _
    $region23: #{tpu_custom_call.1} parent=1 // pred_check_branch
      %36 = sbr.rel (0) target = $region25
    $region24: #{tpu_custom_call.1} parent=1 // pred_region
      _
    $region25: #{tpu_custom_call.1} parent=1 // pred_fallthru
      _
    // Predicated region
    $region26: #{tpu_custom_call.1} parent=1 // pred_check
      _
    $region27: #{tpu_custom_call.1} parent=1 // pred_check_branch
      %38 = sbr.rel (0) target = $region29
    $region28: #{tpu_custom_call.1} parent=1 // pred_region
      _
    $region29: #{tpu_custom_call.1} parent=1 // pred_fallthru
      _
    // Predicated region
    $region30: #{tpu_custom_call.1} parent=1 // pred_check
      _
    $region31: #{tpu_custom_call.1} parent=1 // pred_check_branch
      %40 = sbr.rel (0) target = $region33
    $region32: #{tpu_custom_call.1} parent=1 // pred_region
      %42 = dma.done [#allocation3], 512
    $region33: #{tpu_custom_call.1} parent=1 // pred_fallthru
      _
    %v44 = vld [vmem:[%s0] sm:$0xff]
    %v45 = vpack.c.bf16 %v44, %v44
    %v46 = vld [vmem:[#allocation2] sm:$0xf]
    %v47 = vld [vmem:[#allocation2 + $0x4] sm:$0xf]
    %v48 = vld [vmem:[#allocation2 + $0x8] sm:$0xf]
    %v49 = vld [vmem:[#allocation2 + $0xc] sm:$0xf]
    %v50 = vld [vmem:[#allocation2 + $0x10] sm:$0xf]
    %v51 = vld [vmem:[#allocation2 + $0x14] sm:$0xf]
    %v52 = vld [vmem:[#allocation2 + $0x18] sm:$0xf]
    %v53 = vld [vmem:[#allocation2 + $0x1c] sm:$0xf]
    %v62 = vunpack.c.l.b16 %v46
    %v63 = vunpack.c.l.b16 %v47
    %v64 = vunpack.c.l.b16 %v48
    %v65 = vunpack.c.l.b16 %v49
    %v66 = vunpack.c.l.b16 %v50
    %v67 = vunpack.c.l.b16 %v51
    %v68 = vunpack.c.l.b16 %v52
    %v69 = vunpack.c.l.b16 %v53
    %v70 = vpack.c.b16 %v63, %v62
    %v71 = vpack.c.b16 %v65, %v64
    %v72 = vpack.c.b16 %v67, %v66
    %v73 = vpack.c.b16 %v69, %v68
    %vm78 = vcmask 523264
    %v80 = vsel %vm78, %v45, 0
    %82 = vmatpush.bf16.msra.mxu0 0
    %83 = vmatpush.bf16.msra.mxu0 0
    %84 = vmatpush.bf16.msra.mxu0 0
    %85 = vmatpush.bf16.msra.mxu0 0
    %86 = vmatpush.bf16.msra.mxu0 %v73
    %87 = vmatpush.bf16.msra.mxu0 %v72
    %88 = vmatpush.bf16.msra.mxu0 %v71
    %89 = vmatpush.bf16.msra.mxu0 %v70
    %90 = vmatmul.bf16.gmra.mxu0 %v80
    %v91 = vpop.f32.mrf.mxu0
    %v92 = vadd.f32 0.0, %v91
    %v93 = vpop.f32.mrf.mxu0
    %94 = vdwg.mxu0
    %v95 = vpack.c.bf16 %v92, %v92
    %v96 = vld [vmem:[%s2] sm:$0x1]
    %v98 = vpack.i.b16 %v96, %v96
    %v100 = vperm.slane %v98, 0
    %v101 = vunpack.c.l.bf16 %v95
    %v102 = vunpack.c.l.bf16 %v100
    %v103 = vadd.f32 %v101, %v102
    %v104 = vpack.c.bf16 %v103, %v103
    %v105 = vunpack.c.l.bf16 %v104
    %v106 = vmax.f32 %v105, 0.0
    %v107 = vpack.c.bf16 %v106, %v106
    %v108 = vld [vmem:[%s3] sm:$0xf]
    %v109 = vld [vmem:[%s3 + $0x4] sm:$0xf]
    %v110 = vld [vmem:[%s3 + $0x8] sm:$0xf]
    %v111 = vld [vmem:[%s3 + $0xc] sm:$0xf]
    %v112 = vld [vmem:[%s3 + $0x10] sm:$0xf]
    %v113 = vld [vmem:[%s3 + $0x14] sm:$0xf]
    %v114 = vld [vmem:[%s3 + $0x18] sm:$0xf]
    %v115 = vld [vmem:[%s3 + $0x1c] sm:$0xf]
    %v116 = vld [vmem:[%s3 + $0x20] sm:$0xf]
    %v117 = vld [vmem:[%s3 + $0x24] sm:$0xf]
    %v118 = vld [vmem:[%s3 + $0x28] sm:$0xf]
    %v119 = vld [vmem:[%s3 + $0x2c] sm:$0xf]
    %v120 = vld [vmem:[%s3 + $0x30] sm:$0xf]
    %v121 = vld [vmem:[%s3 + $0x34] sm:$0xf]
    %v122 = vld [vmem:[%s3 + $0x38] sm:$0xf]
    %v123 = vld [vmem:[%s3 + $0x3c] sm:$0xf]
    %v140 = vunpack.c.l.b16 %v108
    %v141 = vunpack.c.l.b16 %v109
    %v142 = vunpack.c.l.b16 %v110
    %v143 = vunpack.c.l.b16 %v111
    %v144 = vunpack.c.l.b16 %v112
    %v145 = vunpack.c.l.b16 %v113
    %v146 = vunpack.c.l.b16 %v114
    %v147 = vunpack.c.l.b16 %v115
    %v148 = vunpack.c.l.b16 %v116
    %v149 = vunpack.c.l.b16 %v117
    %v150 = vunpack.c.l.b16 %v118
    %v151 = vunpack.c.l.b16 %v119
    %v152 = vunpack.c.l.b16 %v120
    %v153 = vunpack.c.l.b16 %v121
    %v154 = vunpack.c.l.b16 %v122
    %v155 = vunpack.c.l.b16 %v123
    %v156 = vpack.c.b16 %v141, %v140
    %v157 = vpack.c.b16 %v143, %v142
    %v158 = vpack.c.b16 %v145, %v144
    %v159 = vpack.c.b16 %v147, %v146
    %v160 = vpack.c.b16 %v149, %v148
    %v161 = vpack.c.b16 %v151, %v150
    %v162 = vpack.c.b16 %v153, %v152
    %v163 = vpack.c.b16 %v155, %v154
    %172 = vmatpush.bf16.msra.mxu0 %v163
    %173 = vmatpush.bf16.msra.mxu0 %v162
    %174 = vmatpush.bf16.msra.mxu0 %v161
    %175 = vmatpush.bf16.msra.mxu0 %v160
    %176 = vmatpush.bf16.msra.mxu0 %v159
    %177 = vmatpush.bf16.msra.mxu0 %v158
    %178 = vmatpush.bf16.msra.mxu0 %v157
    %179 = vmatpush.bf16.msra.mxu0 %v156
    %180 = vmatmul.bf16.gmra.mxu0 %v107
    %v181 = vpop.f32.mrf.mxu0
    %v182 = vadd.f32 0.0, %v181
    %v183 = vpop.f32.mrf.mxu0
    %184 = vdwg.mxu0
    %v185 = vpack.c.bf16 %v182, %v182
    %v186 = vld [vmem:[%s4] sm:$0x1]
    %v188 = vpack.i.b16 %v186, %v186
    %v190 = vperm.slane %v188, 0
    %v191 = vunpack.c.l.bf16 %v185
    %v192 = vunpack.c.l.bf16 %v190
    %v193 = vadd.f32 %v191, %v192
    %v194 = vpack.c.bf16 %v193, %v193
    %v195 = vunpack.c.l.bf16 %v194
    %v196 = vmax.f32 %v195, 0.0
    %v197 = vpack.c.bf16 %v196, %v196
    %v198 = vld [vmem:[%s5] sm:$0xf]
    %v199 = vld [vmem:[%s5 + $0x4] sm:$0xf]
    %v200 = vld [vmem:[%s5 + $0x8] sm:$0xf]
    %v201 = vld [vmem:[%s5 + $0xc] sm:$0xf]
    %v202 = vld [vmem:[%s5 + $0x10] sm:$0xf]
    %v203 = vld [vmem:[%s5 + $0x14] sm:$0xf]
    %v204 = vld [vmem:[%s5 + $0x18] sm:$0xf]
    %v205 = vld [vmem:[%s5 + $0x1c] sm:$0xf]
    %v206 = vld [vmem:[%s5 + $0x20] sm:$0xf]
    %v207 = vld [vmem:[%s5 + $0x24] sm:$0xf]
    %v208 = vld [vmem:[%s5 + $0x28] sm:$0xf]
    %v209 = vld [vmem:[%s5 + $0x2c] sm:$0xf]
    %v210 = vld [vmem:[%s5 + $0x30] sm:$0xf]
    %v211 = vld [vmem:[%s5 + $0x34] sm:$0xf]
    %v212 = vld [vmem:[%s5 + $0x38] sm:$0xf]
    %v213 = vld [vmem:[%s5 + $0x3c] sm:$0xf]
    %v214 = vld [vmem:[%s6] sm:$0x1]
    %v216 = vperm.slane %v214, 0
    %v234 = vunpack.c.l.b16 %v198
    %v235 = vunpack.c.l.b16 %v199
    %v236 = vunpack.c.l.b16 %v200
    %v237 = vunpack.c.l.b16 %v201
    %v238 = vunpack.c.l.b16 %v202
    %v239 = vunpack.c.l.b16 %v203
    %v240 = vunpack.c.l.b16 %v204
    %v241 = vunpack.c.l.b16 %v205
    %v242 = vunpack.c.l.b16 %v206
    %v243 = vunpack.c.l.b16 %v207
    %v244 = vunpack.c.l.b16 %v208
    %v245 = vunpack.c.l.b16 %v209
    %v246 = vunpack.c.l.b16 %v210
    %v247 = vunpack.c.l.b16 %v211
    %v248 = vunpack.c.l.b16 %v212
    %v249 = vunpack.c.l.b16 %v213
    %v250 = vpack.c.b16 %v235, %v234
    %v251 = vpack.c.b16 %v237, %v236
    %v252 = vpack.c.b16 %v239, %v238
    %v253 = vpack.c.b16 %v241, %v240
    %v254 = vpack.c.b16 %v243, %v242
    %v255 = vpack.c.b16 %v245, %v244
    %v256 = vpack.c.b16 %v247, %v246
    %v257 = vpack.c.b16 %v249, %v248
    %266 = vmatpush.bf16.msra.mxu0 %v257
    %267 = vmatpush.bf16.msra.mxu0 %v256
    %268 = vmatpush.bf16.msra.mxu0 %v255
    %269 = vmatpush.bf16.msra.mxu0 %v254
    %270 = vmatpush.bf16.msra.mxu0 %v253
    %271 = vmatpush.bf16.msra.mxu0 %v252
    %272 = vmatpush.bf16.msra.mxu0 %v251
    %273 = vmatpush.bf16.msra.mxu0 %v250
    %274 = vmatmul.bf16.gmra.mxu0 %v197
    %v275 = vpop.f32.mrf.mxu0
    %v276 = vadd.f32 %v216, %v275
    %v277 = vpop.f32.mrf.mxu0
    %278 = vdwg.mxu0
    %v279 = vpack.c.bf16 %v276, %v276
    %vm280 = vcmask 257024
    %281 = vst.msk [vmem:[#allocation5] sm:$0xf] %vm280, %v279
    // Predicated region
    $region34: #{tpu_custom_call.1} parent=1 // pred_check
      _
    $region35: #{tpu_custom_call.1} parent=1 // pred_check_branch
      %283 = sbr.rel (0) target = $region37
    $region36: #{tpu_custom_call.1} parent=1 // pred_region
      %285 = vsyncadd [#allocation4], 0
      %s287 = sshll.u32 [#allocation5], 4
      %s288 = int_to_ptr.vmem [resolvable:$true] %s287
      %s289 = sshll.u32 %s7, 4
      %s290 = int_to_ptr.hbm [resolvable:$true] %s289
      %292 = dma.vmem_to_hbm [thread:$0]  %s288, 64, %s290, [#allocation4]
    $region37: #{tpu_custom_call.1} parent=1 // pred_fallthru
      _
    // Predicated region
    $region38: #{tpu_custom_call.1} parent=1 // pred_check
      _
    $region39: #{tpu_custom_call.1} parent=1 // pred_check_branch
      %294 = sbr.rel (0) target = $region41
    $region40: #{tpu_custom_call.1} parent=1 // pred_region
      %296 = dma.done [#allocation4], 64
    $region41: #{tpu_custom_call.1} parent=1 // pred_fallthru
      _
    %297 = vsyncpa [#allocation3], 1
    %298 = vsyncpa [#allocation4], 1

// kernel: tpu_custom_call.1
$region0: #{tpu_custom_call.1}
  #allocation0 [shape = 'u32[]', space=smem, size = 0x4, offset = 0x4, fixed_abs, tag = 'smem constant byte address 0x4 - core index']
  #allocation1 [shape = 'u32[72,128]{1,0:T(1,128)}', space=vmem, size = 0x9000, scoped, tag = 'internal scratch']
  %s0 = inlined_call_operand.vmem [shape: f32[8,64], index: 0, kind: input, shape index: {}]
  %s1 = inlined_call_operand.hbm [shape: bf16[64,128], index: 1, kind: input, shape index: {}]
  %s2 = inlined_call_operand.vmem [shape: bf16[1,128], index: 2, kind: input, shape index: {}]
  %s3 = inlined_call_operand.vmem [shape: bf16[128,128], index: 3, kind: input, shape index: {}]
  %s4 = inlined_call_operand.vmem [shape: bf16[1,128], index: 4, kind: input, shape index: {}]
  %s5 = inlined_call_operand.vmem [shape: bf16[128,32], index: 5, kind: input, shape index: {}]
  %s6 = inlined_call_operand.vmem [shape: f32[1,32], index: 6, kind: input, shape index: {}]
  %s7 = inlined_call_operand.hbm [shape: bf16[8,32], index: 7, kind: output, shape index: {}]
  %s8 = sld [smem:[#allocation0]]
  $region42: #{tpu_custom_call.1} parent=0
    _
  %s10 = ssub.s32 1, %s8
  %s11 = scalar_select 0, %s10, %s8
  $region1: #{tpu_custom_call.1} parent=0
    #allocation2 [shape = 'u8[16384]{0}', space=vmem, size = 0x4000, scoped, tag = 'input window, operand 1, single buffered']
    #allocation3 [shape = 's32[1]{0}', space=sflag, size = 0x4, scoped, tag = 'scoped memory for tpu_custom_call.1']
    #allocation4 [shape = 's32[1]{0}', space=sflag, size = 0x4, scoped, tag = 'scoped memory for tpu_custom_call.1']
    #allocation5 [shape = 'u8[2048]{0}', space=vmem, size = 0x800, scoped, tag = 'output window, operand 0, single buffered']
    %12 = vsyncpa [#allocation3], 0
    %13 = vsyncpa [#allocation4], 0
    // Predicated region
    $region2: #{tpu_custom_call.1} parent=1 // pred_check
      _
    $region3: #{tpu_custom_call.1} parent=1 // pred_check_branch
      %15 = sbr.rel (0) target = $region5
    $region4: #{tpu_custom_call.1} parent=1 // pred_region
      _
    $region5: #{tpu_custom_call.1} parent=1 // pred_fallthru
      _
    // Predicated region
    $region6: #{tpu_custom_call.1} parent=1 // pred_check
      _
    $region7: #{tpu_custom_call.1} parent=1 // pred_check_branch
      %17 = sbr.rel (0) target = $region9
    $region8: #{tpu_custom_call.1} parent=1 // pred_region
      %19 = vsyncadd [#allocation3], 0
      %s20 = sshll.u32 %s1, 4
      %s21 = int_to_ptr.hbm [resolvable:$true] %s20
      %s22 = sshll.u32 [#allocation2], 4
      %s23 = int_to_ptr.vmem [resolvable:$true] %s22
      %28 = dma.hbm_to_vmem [thread:$0]  %s21, 512, %s23, [#allocation3], 64, 64, 4
    $region9: #{tpu_custom_call.1} parent=1 // pred_fallthru
      _
    // Predicated region
    $region10: #{tpu_custom_call.1} parent=1 // pred_check
      _
    $region11: #{tpu_custom_call.1} parent=1 // pred_check_branch
      %30 = sbr.rel (0) target = $region13
    $region12: #{tpu_custom_call.1} parent=1 // pred_region
      _
    $region13: #{tpu_custom_call.1} parent=1 // pred_fallthru
      _
    // Predicated region
    $region14: #{tpu_custom_call.1} parent=1 // pred_check
      _
    $region15: #{tpu_custom_call.1} parent=1 // pred_check_branch
      %32 = sbr.rel (0) target = $region17
    $region16: #{tpu_custom_call.1} parent=1 // pred_region
      _
    $region17: #{tpu_custom_call.1} parent=1 // pred_fallthru
      _
    // Predicated region
    $region18: #{tpu_custom_call.1} parent=1 // pred_check
      _
    $region19: #{tpu_custom_call.1} parent=1 // pred_check_branch
      %34 = sbr.rel (0) target = $region21
    $region20: #{tpu_custom_call.1} parent=1 // pred_region
      _
    $region21: #{tpu_custom_call.1} parent=1 // pred_fallthru
      _
    // Predicated region
    $region22: #{tpu_custom_call.1} parent=1 // pred_check
      _
    $region23: #{tpu_custom_call.1} parent=1 // pred_check_branch
      %36 = sbr.rel (0) target = $region25
    $region24: #{tpu_custom_call.1} parent=1 // pred_region
      _
    $region25: #{tpu_custom_call.1} parent=1 // pred_fallthru
      _
    // Predicated region
    $region26: #{tpu_custom_call.1} parent=1 // pred_check
      _
    $region27: #{tpu_custom_call.1} parent=1 // pred_check_branch
      %38 = sbr.rel (0) target = $region29
    $region28: #{tpu_custom_call.1} parent=1 // pred_region
      _
    $region29: #{tpu_custom_call.1} parent=1 // pred_fallthru
      _
    // Predicated region
    $region30: #{tpu_custom_call.1} parent=1 // pred_check
      _
    $region31: #{tpu_custom_call.1} parent=1 // pred_check_branch
      %40 = sbr.rel (0) target = $region33
    $region32: #{tpu_custom_call.1} parent=1 // pred_region
      %42 = dma.done [#allocation3], 512
    $region33: #{tpu_custom_call.1} parent=1 // pred_fallthru
      _
    %v44 = vld [vmem:[%s0] sm:$0xff]
    %v45 = vpack.c.bf16 %v44, %v44
    %v46 = vld [vmem:[#allocation2] sm:$0xf]
    %v47 = vld [vmem:[#allocation2 + $0x4] sm:$0xf]
    %v48 = vld [vmem:[#allocation2 + $0x8] sm:$0xf]
    %v49 = vld [vmem:[#allocation2 + $0xc] sm:$0xf]
    %v50 = vld [vmem:[#allocation2 + $0x10] sm:$0xf]
    %v51 = vld [vmem:[#allocation2 + $0x14] sm:$0xf]
    %v52 = vld [vmem:[#allocation2 + $0x18] sm:$0xf]
    %v53 = vld [vmem:[#allocation2 + $0x1c] sm:$0xf]
    %v62 = vunpack.c.l.b16 %v46
    %v63 = vunpack.c.l.b16 %v47
    %v64 = vunpack.c.l.b16 %v48
    %v65 = vunpack.c.l.b16 %v49
    %v66 = vunpack.c.l.b16 %v50
    %v67 = vunpack.c.l.b16 %v51
    %v68 = vunpack.c.l.b16 %v52
    %v69 = vunpack.c.l.b16 %v53
    %v70 = vpack.c.b16 %v63, %v62
    %v71 = vpack.c.b16 %v65, %v64
    %v72 = vpack.c.b16 %v67, %v66
    %v73 = vpack.c.b16 %v69, %v68
    %vm78 = vcmask 523264
    %v80 = vsel %vm78, %v45, 0
    %82 = vmatpush.bf16.msra.mxu0 0
    %83 = vmatpush.bf16.msra.mxu0 0
    %84 = vmatpush.bf16.msra.mxu0 0
    %85 = vmatpush.bf16.msra.mxu0 0
    %86 = vmatpush.bf16.msra.mxu0 %v73
    %87 = vmatpush.bf16.msra.mxu0 %v72
    %88 = vmatpush.bf16.msra.mxu0 %v71
    %89 = vmatpush.bf16.msra.mxu0 %v70
    %90 = vmatmul.bf16.gmra.mxu0 %v80
    %v91 = vpop.f32.mrf.mxu0
    %v92 = vadd.f32 0.0, %v91
    %v93 = vpop.f32.mrf.mxu0
    %94 = vdwg.mxu0
    %v95 = vpack.c.bf16 %v92, %v92
    %v96 = vld [vmem:[%s2] sm:$0x1]
    %v98 = vpack.i.b16 %v96, %v96
    %v100 = vperm.slane %v98, 0
    %v101 = vunpack.c.l.bf16 %v95
    %v102 = vunpack.c.l.bf16 %v100
    %v103 = vadd.f32 %v101, %v102
    %v104 = vpack.c.bf16 %v103, %v103
    %v105 = vunpack.c.l.bf16 %v104
    %v106 = vmax.f32 %v105, 0.0
    %v107 = vpack.c.bf16 %v106, %v106
    %v108 = vld [vmem:[%s3] sm:$0xf]
    %v109 = vld [vmem:[%s3 + $0x4] sm:$0xf]
    %v110 = vld [vmem:[%s3 + $0x8] sm:$0xf]
    %v111 = vld [vmem:[%s3 + $0xc] sm:$0xf]
    %v112 = vld [vmem:[%s3 + $0x10] sm:$0xf]
    %v113 = vld [vmem:[%s3 + $0x14] sm:$0xf]
    %v114 = vld [vmem:[%s3 + $0x18] sm:$0xf]
    %v115 = vld [vmem:[%s3 + $0x1c] sm:$0xf]
    %v116 = vld [vmem:[%s3 + $0x20] sm:$0xf]
    %v117 = vld [vmem:[%s3 + $0x24] sm:$0xf]
    %v118 = vld [vmem:[%s3 + $0x28] sm:$0xf]
    %v119 = vld [vmem:[%s3 + $0x2c] sm:$0xf]
    %v120 = vld [vmem:[%s3 + $0x30] sm:$0xf]
    %v121 = vld [vmem:[%s3 + $0x34] sm:$0xf]
    %v122 = vld [vmem:[%s3 + $0x38] sm:$0xf]
    %v123 = vld [vmem:[%s3 + $0x3c] sm:$0xf]
    %v140 = vunpack.c.l.b16 %v108
    %v141 = vunpack.c.l.b16 %v109
    %v142 = vunpack.c.l.b16 %v110
    %v143 = vunpack.c.l.b16 %v111
    %v144 = vunpack.c.l.b16 %v112
    %v145 = vunpack.c.l.b16 %v113
    %v146 = vunpack.c.l.b16 %v114
    %v147 = vunpack.c.l.b16 %v115
    %v148 = vunpack.c.l.b16 %v116
    %v149 = vunpack.c.l.b16 %v117
    %v150 = vunpack.c.l.b16 %v118
    %v151 = vunpack.c.l.b16 %v119
    %v152 = vunpack.c.l.b16 %v120
    %v153 = vunpack.c.l.b16 %v121
    %v154 = vunpack.c.l.b16 %v122
    %v155 = vunpack.c.l.b16 %v123
    %v156 = vpack.c.b16 %v141, %v140
    %v157 = vpack.c.b16 %v143, %v142
    %v158 = vpack.c.b16 %v145, %v144
    %v159 = vpack.c.b16 %v147, %v146
    %v160 = vpack.c.b16 %v149, %v148
    %v161 = vpack.c.b16 %v151, %v150
    %v162 = vpack.c.b16 %v153, %v152
    %v163 = vpack.c.b16 %v155, %v154
    %172 = vmatpush.bf16.msra.mxu0 %v163
    %173 = vmatpush.bf16.msra.mxu0 %v162
    %174 = vmatpush.bf16.msra.mxu0 %v161
    %175 = vmatpush.bf16.msra.mxu0 %v160
    %176 = vmatpush.bf16.msra.mxu0 %v159
    %177 = vmatpush.bf16.msra.mxu0 %v158
    %178 = vmatpush.bf16.msra.mxu0 %v157
    %179 = vmatpush.bf16.msra.mxu0 %v156
    %180 = vmatmul.bf16.gmra.mxu0 %v107
    %v181 = vpop.f32.mrf.mxu0
    %v182 = vadd.f32 0.0, %v181
    %v183 = vpop.f32.mrf.mxu0
    %184 = vdwg.mxu0
    %v185 = vpack.c.bf16 %v182, %v182
    %v186 = vld [vmem:[%s4] sm:$0x1]
    %v188 = vpack.i.b16 %v186, %v186
    %v190 = vperm.slane %v188, 0
    %v191 = vunpack.c.l.bf16 %v185
    %v192 = vunpack.c.l.bf16 %v190
    %v193 = vadd.f32 %v191, %v192
    %v194 = vpack.c.bf16 %v193, %v193
    %v195 = vunpack.c.l.bf16 %v194
    %v196 = vmax.f32 %v195, 0.0
    %v197 = vpack.c.bf16 %v196, %v196
    %v198 = vld [vmem:[%s5] sm:$0xf]
    %v199 = vld [vmem:[%s5 + $0x4] sm:$0xf]
    %v200 = vld [vmem:[%s5 + $0x8] sm:$0xf]
    %v201 = vld [vmem:[%s5 + $0xc] sm:$0xf]
    %v202 = vld [vmem:[%s5 + $0x10] sm:$0xf]
    %v203 = vld [vmem:[%s5 + $0x14] sm:$0xf]
    %v204 = vld [vmem:[%s5 + $0x18] sm:$0xf]
    %v205 = vld [vmem:[%s5 + $0x1c] sm:$0xf]
    %v206 = vld [vmem:[%s5 + $0x20] sm:$0xf]
    %v207 = vld [vmem:[%s5 + $0x24] sm:$0xf]
    %v208 = vld [vmem:[%s5 + $0x28] sm:$0xf]
    %v209 = vld [vmem:[%s5 + $0x2c] sm:$0xf]
    %v210 = vld [vmem:[%s5 + $0x30] sm:$0xf]
    %v211 = vld [vmem:[%s5 + $0x34] sm:$0xf]
    %v212 = vld [vmem:[%s5 + $0x38] sm:$0xf]
    %v213 = vld [vmem:[%s5 + $0x3c] sm:$0xf]
    %v214 = vld [vmem:[%s6] sm:$0x1]
    %v216 = vperm.slane %v214, 0
    %v234 = vunpack.c.l.b16 %v198
    %v235 = vunpack.c.l.b16 %v199
    %v236 = vunpack.c.l.b16 %v200
    %v237 = vunpack.c.l.b16 %v201
    %v238 = vunpack.c.l.b16 %v202
    %v239 = vunpack.c.l.b16 %v203
    %v240 = vunpack.c.l.b16 %v204
    %v241 = vunpack.c.l.b16 %v205
    %v242 = vunpack.c.l.b16 %v206
    %v243 = vunpack.c.l.b16 %v207
    %v244 = vunpack.c.l.b16 %v208
    %v245 = vunpack.c.l.b16 %v209
    %v246 = vunpack.c.l.b16 %v210
    %v247 = vunpack.c.l.b16 %v211
    %v248 = vunpack.c.l.b16 %v212
    %v249 = vunpack.c.l.b16 %v213
    %v250 = vpack.c.b16 %v235, %v234
    %v251 = vpack.c.b16 %v237, %v236
    %v252 = vpack.c.b16 %v239, %v238
    %v253 = vpack.c.b16 %v241, %v240
    %v254 = vpack.c.b16 %v243, %v242
    %v255 = vpack.c.b16 %v245, %v244
    %v256 = vpack.c.b16 %v247, %v246
    %v257 = vpack.c.b16 %v249, %v248
    %266 = vmatpush.bf16.msra.mxu0 %v257
    %267 = vmatpush.bf16.msra.mxu0 %v256
    %268 = vmatpush.bf16.msra.mxu0 %v255
    %269 = vmatpush.bf16.msra.mxu0 %v254
    %270 = vmatpush.bf16.msra.mxu0 %v253
    %271 = vmatpush.bf16.msra.mxu0 %v252
    %272 = vmatpush.bf16.msra.mxu0 %v251
    %273 = vmatpush.bf16.msra.mxu0 %v250
    %274 = vmatmul.bf16.gmra.mxu0 %v197
    %v275 = vpop.f32.mrf.mxu0
    %v276 = vadd.f32 %v216, %v275
    %v277 = vpop.f32.mrf.mxu0
    %278 = vdwg.mxu0
    %v279 = vpack.c.bf16 %v276, %v276
    %vm280 = vcmask 257024
    %281 = vst.msk [vmem:[#allocation5] sm:$0xf] %vm280, %v279
    // Predicated region
    $region34: #{tpu_custom_call.1} parent=1 // pred_check
      _
    $region35: #{tpu_custom_call.1} parent=1 // pred_check_branch
      %283 = sbr.rel (0) target = $region37
    $region36: #{tpu_custom_call.1} parent=1 // pred_region
      %285 = vsyncadd [#allocation4], 0
      %s287 = sshll.u32 [#allocation5], 4
      %s288 = int_to_ptr.vmem [resolvable:$true] %s287
      %s289 = sshll.u32 %s7, 4
      %s290 = int_to_ptr.hbm [resolvable:$true] %s289
      %292 = dma.vmem_to_hbm [thread:$0]  %s288, 64, %s290, [#allocation4]
    $region37: #{tpu_custom_call.1} parent=1 // pred_fallthru
      _
    // Predicated region
    $region38: #{tpu_custom_call.1} parent=1 // pred_check
      _
    $region39: #{tpu_custom_call.1} parent=1 // pred_check_branch
      %294 = sbr.rel (0) target = $region41
    $region40: #{tpu_custom_call.1} parent=1 // pred_region
      %296 = dma.done [#allocation4], 64
    $region41: #{tpu_custom_call.1} parent=1 // pred_fallthru
      _
    %297 = vsyncpa [#allocation3], 1
    %298 = vsyncpa [#allocation4], 1

</llo_original>
